<compile_context>
chip_gen: v5e
topology: v5e:2x2
jax: 0.10.0
libtpu: 0.0.40
codegen_flags: <defaults>
</compile_context>

<pallas_src>
import re

import jax
import jax.numpy as jnp
from jax.experimental import pallas as pl
from jax.experimental.pallas import tpu as pltpu

_LANE = 128
_SUBLANE_BY_ITEMSIZE = {4: 8, 2: 16, 1: 32}   # dtype-aware min sublane packing
_MULTI_STEP_BYTES = 2 * 1024 * 1024           # above this, force >= ~4 grid steps


def _tpu_generation():
    """Best-effort TPU generation (5, 6, 7, ...) from the device kind string."""
    try:
        kind = jax.devices()[0].device_kind
    except Exception:
        return None
    m = re.search(r"v(\d+)", str(kind).lower())
    return int(m.group(1)) if m else None


def _gen_defaults(gen):
    """(target_block_bytes, vmem_limit_bytes) tuned per TPU generation."""
    if gen is not None and gen >= 7:
        return 8 * 1024 * 1024, 48 * 1024 * 1024
    if gen == 6:
        return 6 * 1024 * 1024, 64 * 1024 * 1024
    if gen == 5:
        return 4 * 1024 * 1024, 32 * 1024 * 1024
    return 4 * 1024 * 1024, 48 * 1024 * 1024


def _lambda_kernel_factory(fn, compute_dtype):
    """Pallas kernel body applying `fn` elementwise to the current tile."""
    def kernel(x_ref, o_ref):
        x = x_ref[...]
        if compute_dtype is not None:
            x = x.astype(compute_dtype)
        # Result is cast back to the input dtype (intended semantics).
        o_ref[...] = fn(x).astype(o_ref.dtype)
    return kernel


def _choose_width(n_aligned, max_width=16384):
    """Largest multiple of 128 dividing n_aligned, capped at max_width."""
    cap = min(n_aligned, max_width)
    cap -= cap % _LANE
    w = cap
    while w > _LANE:
        if n_aligned % w == 0:
            return w
        w -= _LANE
    return _LANE


def make_lambda_layer(fn, *, target_block_bytes=None, vmem_limit_bytes=None,
                      min_kernel_bytes=256 * 1024, donate=False):
    """Pallas equivalent of LambdaLayer(fn) for elementwise, jnp-traceable fn.

    Returns a callable taking an array (e.g. NCHW) and returning fn(x) with
    the same shape/dtype, with the elementwise compute executed on-TPU in a
    Pallas kernel (for inputs large enough to be worth a kernel launch).
    """
    gen = _tpu_generation()
    auto_block, auto_vmem = _gen_defaults(gen)
    block_bytes = auto_block if target_block_bytes is None else target_block_bytes
    vmem_bytes = auto_vmem if vmem_limit_bytes is None else vmem_limit_bytes
    # v6e/v7x have bf16 VPU/EUP paths; only upcast narrow floats on v5e/unknown.
    upcast_narrow = (gen is None) or (gen < 6)

    def apply(x):
        orig_shape, orig_dtype = x.shape, x.dtype
        n = x.size
        itemsize = jnp.dtype(orig_dtype).itemsize

        compute_dtype = (
            jnp.float32
            if (upcast_narrow and jnp.issubdtype(orig_dtype, jnp.floating)
                and itemsize < 4)
            else None
        )

        def plain(v):
            vc = v.astype(compute_dtype) if compute_dtype is not None else v
            return fn(vc).astype(orig_dtype)

        # Small-input bypass: a single fused XLA elementwise pass is already
        # at roofline; kernel launch + reshape plumbing would dominate.
        if n * itemsize < min_kernel_bytes or n < _LANE:
            return plain(x)

        min_sub = _SUBLANE_BY_ITEMSIZE.get(itemsize, 8)
        # Size blocks by the *compute* itemsize (bf16 upcast to f32 in-kernel
        # would otherwise double the live working set).
        sizing_itemsize = max(itemsize, 4) if compute_dtype is not None else itemsize

        x_flat = x.reshape(-1)
        n_main = (n // _LANE) * _LANE          # 128-aligned prefix
        tail = n - n_main                       # < 128 elements, handled in jnp
        main_flat = x_flat if tail == 0 else x_flat[:n_main]

        # Lane-dense slab: wide last dim (multiple of 128), full-width blocks.
        width = _choose_width(n_main)
        rows = n_main // width
        bytes_per_row = width * sizing_itemsize

        rows_per_block = max(1, block_bytes // bytes_per_row)
        # Guarantee >= ~4 grid steps for arrays above ~2 MiB so DMA-in /
        # compute / DMA-out overlap and both v7x TensorCores get work.
        if rows * bytes_per_row >= _MULTI_STEP_BYTES:
            cap_rows = pl.cdiv(rows, 4)
            cap_rows = pl.cdiv(cap_rows, min_sub) * min_sub
            rows_per_block = min(rows_per_block, max(min_sub, cap_rows))

        if rows_per_block >= rows:
            block_rows = rows                   # whole (remaining) array in one block
        else:
            block_rows = max(min_sub, (rows_per_block // min_sub) * min_sub)

        grid = (pl.cdiv(rows, block_rows),)     # ragged last block handled by Pallas
        x2d = main_flat.reshape(rows, width)

        kernel = _lambda_kernel_factory(fn, compute_dtype)
        out2d = pl.pallas_call(
            kernel,
            out_shape=jax.ShapeDtypeStruct((rows, width), orig_dtype),
            grid=grid,
            in_specs=[pl.BlockSpec((block_rows, width), lambda i: (i, 0))],
            out_specs=pl.BlockSpec((block_rows, width), lambda i: (i, 0)),
            compiler_params=pltpu.CompilerParams(
                dimension_semantics=("parallel",),
                vmem_limit_bytes=vmem_bytes),
            input_output_aliases=({0: 0} if donate else {}),
        )(x2d)

        out_flat = out2d.reshape(-1)
        if tail:
            # TODO(synk): a masked in-kernel tail store would also remove the
            # concatenate pass; the tail path is rare so keep it simple.
            out_flat = jnp.concatenate([out_flat, plain(x_flat[n_main:])])
        return out_flat.reshape(orig_shape)

    return apply


if __name__ == "__main__":
    key = jax.random.PRNGKey(0)

    # The "lambda" the layer wraps: SiLU in its single-EUP (tanh) form.
    silu = lambda t: 0.5 * t * (jnp.tanh(0.5 * t) + 1.0)

    layer = make_lambda_layer(silu)                         # tuned defaults
    layer_force = make_lambda_layer(silu, min_kernel_bytes=0)  # force kernel path

    # 1) NCHW f32 (B=2, C=4, H=16, W=16) forced through the Pallas kernel path.
    x = jax.random.normal(key, (2, 4, 16, 16), dtype=jnp.float32)
    out = jax.block_until_ready(layer_force(x))
    assert out.shape == x.shape and out.dtype == x.dtype
    assert jnp.allclose(out, silu(x), atol=1e-5, rtol=1e-5)

    # 2) Same input through the tuned layer (exercises the small-input bypass).
    out_b = jax.block_until_ready(layer(x))
    assert jnp.allclose(out_b, silu(x), atol=1e-5, rtol=1e-5)

    # 3) Unaligned size: Pallas on the 128-aligned prefix, jnp on the tail.
    x2 = jax.random.normal(jax.random.PRNGKey(1), (3, 217), dtype=jnp.float32)
    out2 = jax.block_until_ready(layer_force(x2))
    assert out2.shape == x2.shape
    assert jnp.allclose(out2, silu(x2), atol=1e-5, rtol=1e-5)

    # 4) bf16 input (f32 compute on v5e/unknown, native bf16 on v6e/v7x).
    x3 = jax.random.normal(jax.random.PRNGKey(2), (2, 4, 16, 16), dtype=jnp.bfloat16)
    out3 = jax.block_until_ready(layer_force(x3))
    ref3 = silu(x3.astype(jnp.float32)).astype(jnp.bfloat16)
    assert out3.dtype == jnp.bfloat16
    assert jnp.allclose(out3.astype(jnp.float32), ref3.astype(jnp.float32),
                        atol=5e-2, rtol=5e-2)

    # 5) Larger activation (4 MiB) through tuned defaults: multi-block grid
    #    (>= 4 steps) with generation-tuned block size / VMEM limit.
    x4 = jax.random.normal(jax.random.PRNGKey(3), (8, 32, 64, 64), dtype=jnp.float32)
    out4 = jax.block_until_ready(layer(x4))
    assert out4.shape == x4.shape
    assert jnp.allclose(out4, silu(x4), atol=1e-5, rtol=1e-5)

    print("KERNEL_OK")
</pallas_src>

<mosaic_0001>
module attributes {stable_mosaic.version = 11 : i64} {
  func.func @kernel(%arg0: i32, %arg1: memref<1x2048xf32, #tpu.memory_space<vmem>>, %arg2: memref<1x2048xf32, #tpu.memory_space<vmem>>) attributes {dimension_semantics = [#tpu.dimension_semantics<parallel>], iteration_bounds = array<i64: 1>, scalar_prefetch = 0 : i64, scratch_operands = 0 : i64, tpu.core_type = #tpu.core_type<tc>, window_params = [{transform_indices = @transform_0, window_bounds = array<i64: 1, 2048>}, {transform_indices = @transform_1, window_bounds = array<i64: 1, 2048>}]} {
    %c0 = arith.constant 0 : index
    %c0_0 = arith.constant 0 : index
    %0 = vector.load %arg1[%c0, %c0_0] : memref<1x2048xf32, #tpu.memory_space<vmem>>, vector<1x2048xf32>
    %cst = arith.constant 5.000000e-01 : f32
    %1 = vector.broadcast %cst : f32 to vector<1x2048xf32>
    %2 = arith.mulf %1, %0 : vector<1x2048xf32>
    %cst_1 = arith.constant 5.000000e-01 : f32
    %3 = vector.broadcast %cst_1 : f32 to vector<1x2048xf32>
    %4 = arith.mulf %3, %0 : vector<1x2048xf32>
    %5 = math.tanh %4 : vector<1x2048xf32>
    %cst_2 = arith.constant 1.000000e+00 : f32
    %6 = vector.broadcast %cst_2 : f32 to vector<1x2048xf32>
    %7 = arith.addf %5, %6 : vector<1x2048xf32>
    %8 = arith.mulf %2, %7 : vector<1x2048xf32>
    %c0_3 = arith.constant 0 : index
    %c0_4 = arith.constant 0 : index
    %9 = vector.load %arg2[%c0_3, %c0_4] : memref<1x2048xf32, #tpu.memory_space<vmem>>, vector<1x2048xf32>
    tpu.vector_store %arg2[%c0_3, %c0_4], %8 {strides = array<i32>} : memref<1x2048xf32, #tpu.memory_space<vmem>>, vector<1x2048xf32>,
    return
  }
  func.func @transform_0(%arg0: i32) -> (i32, i32) {
    %c0_i32 = arith.constant 0 : i32
    %c0_i32_0 = arith.constant 0 : i32
    return %arg0, %c0_i32 : i32, i32
  }
  func.func @transform_1(%arg0: i32) -> (i32, i32) {
    %c0_i32 = arith.constant 0 : i32
    %c0_i32_0 = arith.constant 0 : i32
    return %arg0, %c0_i32 : i32, i32
  }
}

</mosaic_0001>

<llo_original>
// kernel: tpu_custom_call.1
$region0: #{tpu_custom_call.1}
  #allocation0 [shape = 'u32[]', space=smem, size = 0x4, offset = 0x4, fixed_abs, tag = 'smem constant byte address 0x4 - core index']
  #allocation1 [shape = 'u32[72,128]{1,0:T(1,128)}', space=vmem, size = 0x9000, scoped, tag = 'internal scratch']
  %s0 = inlined_call_operand.hbm [shape: f32[1,2048], index: 0, kind: input, shape index: {}]
  %s1 = inlined_call_operand.hbm [shape: f32[1,2048], index: 1, kind: output, shape index: {}]
  %s2 = sld [smem:[#allocation0]]
  $region18: #{tpu_custom_call.1} parent=0
    _
  %s4 = ssub.s32 1, %s2
  %s5 = scalar_select 0, %s4, %s2
  $region1: #{tpu_custom_call.1} parent=0
    #allocation2 [shape = 'u8[8192]{0}', space=vmem, size = 0x2000, scoped, tag = 'input window, operand 0, single buffered']
    #allocation3 [shape = 's32[1]{0}', space=sflag, size = 0x4, scoped, tag = 'scoped memory for tpu_custom_call.1']
    #allocation4 [shape = 's32[1]{0}', space=sflag, size = 0x4, scoped, tag = 'scoped memory for tpu_custom_call.1']
    #allocation5 [shape = 'u8[8192]{0}', space=vmem, size = 0x2000, scoped, tag = 'output window, operand 0, single buffered']
    %6 = vsyncpa [#allocation3], 0
    %7 = vsyncpa [#allocation4], 0
    // Predicated region
    $region2: #{tpu_custom_call.1} parent=1 // pred_check
      _
    $region3: #{tpu_custom_call.1} parent=1 // pred_check_branch
      %9 = sbr.rel (0) target = $region5
    $region4: #{tpu_custom_call.1} parent=1 // pred_region
      %11 = vsyncadd [#allocation3], 0
      %s13 = sshll.u32 %s0, 4
      %s14 = int_to_ptr.hbm [resolvable:$true] %s13
      %s15 = sshll.u32 [#allocation2], 4
      %s16 = int_to_ptr.vmem [resolvable:$true] %s15
      %18 = dma.hbm_to_vmem [thread:$0]  %s14, 256, %s16, [#allocation3]
    $region5: #{tpu_custom_call.1} parent=1 // pred_fallthru
      _
    // Predicated region
    $region6: #{tpu_custom_call.1} parent=1 // pred_check
      _
    $region7: #{tpu_custom_call.1} parent=1 // pred_check_branch
      %20 = sbr.rel (0) target = $region9
    $region8: #{tpu_custom_call.1} parent=1 // pred_region
      %22 = dma.done [#allocation3], 256
    $region9: #{tpu_custom_call.1} parent=1 // pred_fallthru
      _
    %v23 = vld [vmem:[#allocation2] sm:$0xff]
    %v24 = vld [vmem:[#allocation2 + $0x8] sm:$0xff]
    %v25 = vmul.f32 %v23, 0.5
    %v26 = vmul.f32 %v24, 0.5
    %v27 = vtanh.pop %v25
    %v28 = vtanh.pop %v26
    %v29 = vadd.f32 %v27, 1.0
    %v30 = vadd.f32 %v28, 1.0
    %v31 = vmul.f32 %v25, %v29
    %v32 = vmul.f32 %v26, %v30
    %33 = vst [vmem:[#allocation5] sm:$0xff] %v31
    %34 = vst [vmem:[#allocation5 + $0x8] sm:$0xff] %v32
    // Predicated region
    $region10: #{tpu_custom_call.1} parent=1 // pred_check
      _
    $region11: #{tpu_custom_call.1} parent=1 // pred_check_branch
      %36 = sbr.rel (0) target = $region13
    $region12: #{tpu_custom_call.1} parent=1 // pred_region
      %38 = vsyncadd [#allocation4], 0
      %s40 = sshll.u32 [#allocation5], 4
      %s41 = int_to_ptr.vmem [resolvable:$true] %s40
      %s42 = sshll.u32 %s1, 4
      %s43 = int_to_ptr.hbm [resolvable:$true] %s42
      %45 = dma.vmem_to_hbm [thread:$0]  %s41, 256, %s43, [#allocation4]
    $region13: #{tpu_custom_call.1} parent=1 // pred_fallthru
      _
    // Predicated region
    $region14: #{tpu_custom_call.1} parent=1 // pred_check
      _
    $region15: #{tpu_custom_call.1} parent=1 // pred_check_branch
      %47 = sbr.rel (0) target = $region17
    $region16: #{tpu_custom_call.1} parent=1 // pred_region
      %49 = dma.done [#allocation4], 256
    $region17: #{tpu_custom_call.1} parent=1 // pred_fallthru
      _
    %50 = vsyncpa [#allocation3], 1
    %51 = vsyncpa [#allocation4], 1

</llo_original>
